<compile_context>
chip_gen: v6e
topology: v6e:2x2x1
jax: 0.10.0
libtpu: 0.0.40
codegen_flags: <defaults>
</compile_context>

<pallas_src>
import functools

import jax
import jax.numpy as jnp
from jax import lax
from jax.experimental import pallas as pl
from jax.experimental.pallas import tpu as pltpu


def _round_up(x, m):
    return (x + m - 1) // m * m


# -----------------------------------------------------------------------------
# Shared fused forward body: embedding -> input projection -> unrolled RNN ->
# classifier head.  bf16 on the MXU, f32 everywhere else.
# -----------------------------------------------------------------------------
def _fused_logits(ids_ref, emb_ref, wih_ref, whh_ref, brnn_ref,
                  wlin_ref, blin_ref, *, T, B):
    TB = ids_ref.shape[0]
    Vp = emb_ref.shape[0]
    Hp = whh_ref.shape[1]

    # Embedding lookup as one-hot @ table (MXU).  Table row 0 is zero
    # (padding_idx=0), so padded ids / padded batch rows are inert.
    ids = ids_ref[...]                                             # (TB, 1)
    vocab_iota = lax.broadcasted_iota(jnp.int32, (TB, Vp), 1)      # (TB, Vp)
    onehot = (ids == vocab_iota).astype(jnp.bfloat16)              # exact 0/1
    emb = jnp.dot(onehot, emb_ref[...],
                  preferred_element_type=jnp.float32)              # (TB, Ep)

    # Hoisted input projection: one big matmul + bias, off the serial path.
    xw = (jnp.dot(emb.astype(jnp.bfloat16), wih_ref[...],
                  preferred_element_type=jnp.float32)
          + brnn_ref[...])                                         # (TB, Hp)

    # Serial recurrence: only h @ Whh (bf16 MXU) + tanh (f32 EUP) on the
    # critical path; h stays vreg-resident; T is static -> unrolled.
    h = jnp.zeros((B, Hp), jnp.float32)
    for t in range(T):
        h = jnp.tanh(xw[t * B:(t + 1) * B, :]
                     + jnp.dot(h.astype(jnp.bfloat16), whh_ref[...],
                               preferred_element_type=jnp.float32))

    # Classifier head; padded class lanes stay exactly zero (zero-padded
    # Wlin columns / blin lanes).
    return (jnp.dot(h.astype(jnp.bfloat16), wlin_ref[...],
                    preferred_element_type=jnp.float32)
            + blin_ref[...])                                       # (B, Cp)


def logits_kernel(ids_ref, emb_ref, wih_ref, whh_ref, brnn_ref,
                  wlin_ref, blin_ref, logits_ref, *, T, B):
    # Lane-dense (8, 128) unmasked store.
    logits_ref[...] = _fused_logits(ids_ref, emb_ref, wih_ref, whh_ref,
                                    brnn_ref, wlin_ref, blin_ref, T=T, B=B)


def loss_kernel(ids_ref, labels_ref, emb_ref, wih_ref, whh_ref, brnn_ref,
                wlin_ref, blin_ref, loss_ref, *, T, B, n_rows, n_cls):
    """Fused forward + cross_entropy (mean over the n_rows real batch rows)."""
    logits = _fused_logits(ids_ref, emb_ref, wih_ref, whh_ref,
                           brnn_ref, wlin_ref, blin_ref, T=T, B=B)  # (Bp, Cp)
    Bp, Cp = logits.shape

    lane = lax.broadcasted_iota(jnp.int32, (Bp, Cp), 1)
    cls_valid = lane < n_cls
    masked = jnp.where(cls_valid, logits, jnp.float32(-1e30))
    m = jnp.max(masked, axis=-1, keepdims=True)                     # (Bp, 1)
    sumexp = jnp.sum(jnp.where(cls_valid, jnp.exp(masked - m), 0.0),
                     axis=-1, keepdims=True)                        # (Bp, 1)
    lse = m + jnp.log(sumexp)                                       # (Bp, 1)

    onehot_y = (lane == labels_ref[...]).astype(jnp.float32)        # (Bp, Cp)
    logit_y = jnp.sum(logits * onehot_y, axis=-1, keepdims=True)    # (Bp, 1)

    nll = lse - logit_y                                             # (Bp, 1)
    row_valid = lax.broadcasted_iota(jnp.int32, (Bp, 1), 0) < n_rows
    loss_ref[...] = jnp.sum(jnp.where(row_valid, nll, 0.0),
                            keepdims=True) / n_rows                 # (1, 1)


# -----------------------------------------------------------------------------
# One-time parameter prep (padding + bf16 cast) -- hoisted off the call path.
# -----------------------------------------------------------------------------
def prepare_params(params):
    emb, w_ih, w_hh = params["embedding"], params["w_ih"], params["w_hh"]
    b_rnn, w_lin, b_lin = params["b_rnn"], params["w_lin"], params["b_lin"]
    V, E = emb.shape
    H = w_hh.shape[0]
    C = w_lin.shape[1]
    Vp, Ep = _round_up(V, 8), _round_up(E, 128)
    Hp, Cp = _round_up(H, 128), _round_up(C, 128)
    return dict(
        emb=jnp.pad(emb, ((0, Vp - V), (0, Ep - E))).astype(jnp.bfloat16),
        wih=jnp.pad(w_ih, ((0, Ep - E), (0, Hp - H))).astype(jnp.bfloat16),
        whh=jnp.pad(w_hh, ((0, Hp - H), (0, Hp - H))).astype(jnp.bfloat16),
        brnn=jnp.pad(b_rnn, ((0, 0), (0, Hp - H))),                 # f32
        wlin=jnp.pad(w_lin, ((0, Hp - H), (0, Cp - C))).astype(jnp.bfloat16),
        blin=jnp.pad(b_lin, ((0, 0), (0, Cp - C))),                 # f32
    )


# -----------------------------------------------------------------------------
# Jitted per-call wrappers: only the tiny id/label transform runs per call.
# -----------------------------------------------------------------------------
_VMEM = pl.BlockSpec(memory_space=pltpu.MemorySpace.VMEM)
_CPARAMS = pltpu.CompilerParams(vmem_limit_bytes=32 * 1024 * 1024)


def _ids_time_major(x, Bp):
    B, T = x.shape
    ids_p = jnp.pad(x.astype(jnp.int32), ((0, Bp - B), (0, 0)))     # (Bp, T)
    return jnp.transpose(ids_p, (1, 0)).reshape(T * Bp, 1)          # (T*Bp, 1)


@functools.partial(jax.jit, static_argnames=("n_class",))
def _logits_call(prep, x, *, n_class):
    B, T = x.shape
    Bp = _round_up(B, 8)
    Cp = prep["wlin"].shape[1]
    ids_tm = _ids_time_major(x, Bp)
    kernel = functools.partial(logits_kernel, T=T, B=Bp)
    logits_p = pl.pallas_call(
        kernel,
        out_shape=jax.ShapeDtypeStruct((Bp, Cp), jnp.float32),
        in_specs=[_VMEM] * 7,
        out_specs=_VMEM,
        compiler_params=_CPARAMS,
    )(ids_tm, prep["emb"], prep["wih"], prep["whh"], prep["brnn"],
      prep["wlin"], prep["blin"])
    return logits_p[:B, :n_class]


@functools.partial(jax.jit, static_argnames=("n_class",))
def _loss_call(prep, x, y, *, n_class):
    B, T = x.shape
    Bp = _round_up(B, 8)
    ids_tm = _ids_time_major(x, Bp)
    labels = jnp.pad(y.astype(jnp.int32), (0, Bp - B)).reshape(Bp, 1)
    kernel = functools.partial(loss_kernel, T=T, B=Bp, n_rows=B, n_cls=n_class)
    loss_p = pl.pallas_call(
        kernel,
        out_shape=jax.ShapeDtypeStruct((1, 1), jnp.float32),
        in_specs=[_VMEM] * 8,
        out_specs=_VMEM,
        compiler_params=_CPARAMS,
    )(ids_tm, labels, prep["emb"], prep["wih"], prep["whh"], prep["brnn"],
      prep["wlin"], prep["blin"])
    return loss_p[0, 0]


def nlp_multiclass_forward(prep, x, y=None, *, n_class):
    """x: (B, T) int token ids; y: optional (B,) int class labels."""
    if y is None:
        return _logits_call(prep, x, n_class=n_class)
    return _loss_call(prep, x, y, n_class=n_class)


# -----------------------------------------------------------------------------
# Pure-JAX f32 reference (correctness check only)
# -----------------------------------------------------------------------------
def reference_forward(params, x):
    emb = jnp.take(params["embedding"], x, axis=0)                  # (B, T, E)
    h = jnp.zeros((x.shape[0], params["w_hh"].shape[0]), jnp.float32)
    for t in range(x.shape[1]):
        h = jnp.tanh(emb[:, t, :] @ params["w_ih"]
                     + h @ params["w_hh"] + params["b_rnn"])
    return h @ params["w_lin"] + params["b_lin"]


def reference_loss(params, x, y):
    logits = reference_forward(params, x)
    logp = jax.nn.log_softmax(logits, axis=-1)
    return -jnp.mean(jnp.take_along_axis(logp, y[:, None], axis=-1))


# -----------------------------------------------------------------------------
# Deterministic parameter init (mirrors nn.Embedding / nn.RNN / nn.Linear)
# -----------------------------------------------------------------------------
def init_params(key, vocab_size, embedding_size, hidden_size, n_class):
    k = jax.random.split(key, 7)
    inv_sqrt_h = 1.0 / jnp.sqrt(hidden_size)

    emb = jax.random.normal(k[0], (vocab_size, embedding_size), jnp.float32)
    emb = emb.at[0].set(0.0)  # padding_idx=0

    def u(key, shape):
        return jax.random.uniform(key, shape, jnp.float32, -inv_sqrt_h, inv_sqrt_h)

    w_ih = u(k[1], (embedding_size, hidden_size))   # transposed (E, H)
    w_hh = u(k[2], (hidden_size, hidden_size))      # transposed (H, H)
    b_rnn = u(k[3], (1, hidden_size)) + u(k[4], (1, hidden_size))  # b_ih + b_hh
    w_lin = u(k[5], (hidden_size, n_class))         # transposed (H, C)
    b_lin = u(k[6], (1, n_class))

    return dict(embedding=emb, w_ih=w_ih, w_hh=w_hh, b_rnn=b_rnn,
                w_lin=w_lin, b_lin=b_lin)


# -----------------------------------------------------------------------------
if __name__ == "__main__":
    VOCAB, EMB, HID, NCLS = 30, 16, 32, 8
    B, T = 2, 8

    key = jax.random.PRNGKey(0)
    kp, kx, ky = jax.random.split(key, 3)

    params = init_params(kp, VOCAB, EMB, HID, NCLS)
    x = jax.random.randint(kx, (B, T), 0, VOCAB, dtype=jnp.int32)
    y = jax.random.randint(ky, (B,), 0, NCLS, dtype=jnp.int32)

    prep = prepare_params(params)   # one-time pad + bf16 cast (off call path)

    y_pred = jax.block_until_ready(nlp_multiclass_forward(prep, x, n_class=NCLS))
    loss = jax.block_until_ready(nlp_multiclass_forward(prep, x, y, n_class=NCLS))

    y_ref = jax.block_until_ready(reference_forward(params, x))
    loss_ref = jax.block_until_ready(reference_loss(params, x, y))

    assert y_pred.shape == (B, NCLS)
    assert loss.shape == ()
    # Looser tolerance than the pure-f32 version: bf16 MXU operand rounding
    # compounds through the T-step recurrence (accumulation/tanh stay f32).
    assert bool(jnp.allclose(y_pred, y_ref, atol=5e-2, rtol=5e-2)), "logits mismatch vs reference"
    assert bool(jnp.allclose(loss, loss_ref, atol=5e-2, rtol=5e-2)), "loss mismatch vs reference"
    print("KERNEL_OK")
</pallas_src>

<mosaic_0001>
module attributes {stable_mosaic.version = 11 : i64} {
  func.func @logits_kernel(%arg0: memref<64x1xi32, #tpu.memory_space<vmem>>, %arg1: memref<32x128xbf16, #tpu.memory_space<vmem>>, %arg2: memref<128x128xbf16, #tpu.memory_space<vmem>>, %arg3: memref<128x128xbf16, #tpu.memory_space<vmem>>, %arg4: memref<1x128xf32, #tpu.memory_space<vmem>>, %arg5: memref<128x128xbf16, #tpu.memory_space<vmem>>, %arg6: memref<1x128xf32, #tpu.memory_space<vmem>>, %arg7: memref<8x128xf32, #tpu.memory_space<vmem>>) attributes {dimension_semantics = [], scalar_prefetch = 0 : i64, scratch_operands = 0 : i64, tpu.core_type = #tpu.core_type<tc>} {
    %c0 = arith.constant 0 : index
    %c0_0 = arith.constant 0 : index
    %0 = vector.load %arg0[%c0, %c0_0] : memref<64x1xi32, #tpu.memory_space<vmem>>, vector<64x1xi32>
    %1 = tpu.iota {dimensions = array<i32: 1>} : vector<64x32xi32>
    %2 = vector.broadcast %0 : vector<64x1xi32> to vector<64x32xi32>
    %3 = arith.cmpi eq, %2, %1 : vector<64x32xi32>
    %4 = arith.extui %3 : vector<64x32xi1> to vector<64x32xi32>
    %5 = arith.sitofp %4 : vector<64x32xi32> to vector<64x32xf32>
    %6 = arith.truncf %5 : vector<64x32xf32> to vector<64x32xbf16>
    %c0_1 = arith.constant 0 : index
    %c0_2 = arith.constant 0 : index
    %7 = vector.load %arg1[%c0_1, %c0_2] : memref<32x128xbf16, #tpu.memory_space<vmem>>, vector<32x128xbf16>
    %cst = arith.constant dense<0.000000e+00> : vector<64x128xf32>
    %8 = tpu.matmul %6, %7, %cst {dimension_numbers = #tpu.dot_dimension_numbers<[1], [0], [0], [1], [0, 0, 1, 1], [], []>} : vector<64x32xbf16>, vector<32x128xbf16>, vector<64x128xf32> -> vector<64x128xf32>
    %9 = arith.truncf %8 : vector<64x128xf32> to vector<64x128xbf16>
    %c0_3 = arith.constant 0 : index
    %c0_4 = arith.constant 0 : index
    %10 = vector.load %arg2[%c0_3, %c0_4] : memref<128x128xbf16, #tpu.memory_space<vmem>>, vector<128x128xbf16>
    %cst_5 = arith.constant dense<0.000000e+00> : vector<64x128xf32>
    %11 = tpu.matmul %9, %10, %cst_5 {dimension_numbers = #tpu.dot_dimension_numbers<[1], [0], [0], [1], [0, 0, 1, 1], [], []>} : vector<64x128xbf16>, vector<128x128xbf16>, vector<64x128xf32> -> vector<64x128xf32>
    %c0_6 = arith.constant 0 : index
    %c0_7 = arith.constant 0 : index
    %12 = vector.load %arg4[%c0_6, %c0_7] : memref<1x128xf32, #tpu.memory_space<vmem>>, vector<1x128xf32>
    %13 = vector.broadcast %12 : vector<1x128xf32> to vector<64x128xf32>
    %14 = arith.addf %11, %13 : vector<64x128xf32>
    %cst_8 = arith.constant 0.000000e+00 : f32
    %15 = vector.broadcast %cst_8 : f32 to vector<8x128xf32>
    %16 = vector.extract_strided_slice %14 {offsets = [0, 0], sizes = [8, 128], strides = [1, 1]} : vector<64x128xf32> to vector<8x128xf32>
    %17 = arith.truncf %15 : vector<8x128xf32> to vector<8x128xbf16>
    %c0_9 = arith.constant 0 : index
    %c0_10 = arith.constant 0 : index
    %18 = vector.load %arg3[%c0_9, %c0_10] : memref<128x128xbf16, #tpu.memory_space<vmem>>, vector<128x128xbf16>
    %cst_11 = arith.constant dense<0.000000e+00> : vector<8x128xf32>
    %19 = tpu.matmul %17, %18, %cst_11 {dimension_numbers = #tpu.dot_dimension_numbers<[1], [0], [0], [1], [0, 0, 1, 1], [], []>} : vector<8x128xbf16>, vector<128x128xbf16>, vector<8x128xf32> -> vector<8x128xf32>
    %20 = arith.addf %16, %19 : vector<8x128xf32>
    %21 = math.tanh %20 : vector<8x128xf32>
    %22 = vector.extract_strided_slice %14 {offsets = [8, 0], sizes = [8, 128], strides = [1, 1]} : vector<64x128xf32> to vector<8x128xf32>
    %23 = arith.truncf %21 : vector<8x128xf32> to vector<8x128xbf16>
    %c0_12 = arith.constant 0 : index
    %c0_13 = arith.constant 0 : index
    %24 = vector.load %arg3[%c0_12, %c0_13] : memref<128x128xbf16, #tpu.memory_space<vmem>>, vector<128x128xbf16>
    %cst_14 = arith.constant dense<0.000000e+00> : vector<8x128xf32>
    %25 = tpu.matmul %23, %24, %cst_14 {dimension_numbers = #tpu.dot_dimension_numbers<[1], [0], [0], [1], [0, 0, 1, 1], [], []>} : vector<8x128xbf16>, vector<128x128xbf16>, vector<8x128xf32> -> vector<8x128xf32>
    %26 = arith.addf %22, %25 : vector<8x128xf32>
    %27 = math.tanh %26 : vector<8x128xf32>
    %28 = vector.extract_strided_slice %14 {offsets = [16, 0], sizes = [8, 128], strides = [1, 1]} : vector<64x128xf32> to vector<8x128xf32>
    %29 = arith.truncf %27 : vector<8x128xf32> to vector<8x128xbf16>
    %c0_15 = arith.constant 0 : index
    %c0_16 = arith.constant 0 : index
    %30 = vector.load %arg3[%c0_15, %c0_16] : memref<128x128xbf16, #tpu.memory_space<vmem>>, vector<128x128xbf16>
    %cst_17 = arith.constant dense<0.000000e+00> : vector<8x128xf32>
    %31 = tpu.matmul %29, %30, %cst_17 {dimension_numbers = #tpu.dot_dimension_numbers<[1], [0], [0], [1], [0, 0, 1, 1], [], []>} : vector<8x128xbf16>, vector<128x128xbf16>, vector<8x128xf32> -> vector<8x128xf32>
    %32 = arith.addf %28, %31 : vector<8x128xf32>
    %33 = math.tanh %32 : vector<8x128xf32>
    %34 = vector.extract_strided_slice %14 {offsets = [24, 0], sizes = [8, 128], strides = [1, 1]} : vector<64x128xf32> to vector<8x128xf32>
    %35 = arith.truncf %33 : vector<8x128xf32> to vector<8x128xbf16>
    %c0_18 = arith.constant 0 : index
    %c0_19 = arith.constant 0 : index
    %36 = vector.load %arg3[%c0_18, %c0_19] : memref<128x128xbf16, #tpu.memory_space<vmem>>, vector<128x128xbf16>
    %cst_20 = arith.constant dense<0.000000e+00> : vector<8x128xf32>
    %37 = tpu.matmul %35, %36, %cst_20 {dimension_numbers = #tpu.dot_dimension_numbers<[1], [0], [0], [1], [0, 0, 1, 1], [], []>} : vector<8x128xbf16>, vector<128x128xbf16>, vector<8x128xf32> -> vector<8x128xf32>
    %38 = arith.addf %34, %37 : vector<8x128xf32>
    %39 = math.tanh %38 : vector<8x128xf32>
    %40 = vector.extract_strided_slice %14 {offsets = [32, 0], sizes = [8, 128], strides = [1, 1]} : vector<64x128xf32> to vector<8x128xf32>
    %41 = arith.truncf %39 : vector<8x128xf32> to vector<8x128xbf16>
    %c0_21 = arith.constant 0 : index
    %c0_22 = arith.constant 0 : index
    %42 = vector.load %arg3[%c0_21, %c0_22] : memref<128x128xbf16, #tpu.memory_space<vmem>>, vector<128x128xbf16>
    %cst_23 = arith.constant dense<0.000000e+00> : vector<8x128xf32>
    %43 = tpu.matmul %41, %42, %cst_23 {dimension_numbers = #tpu.dot_dimension_numbers<[1], [0], [0], [1], [0, 0, 1, 1], [], []>} : vector<8x128xbf16>, vector<128x128xbf16>, vector<8x128xf32> -> vector<8x128xf32>
    %44 = arith.addf %40, %43 : vector<8x128xf32>
    %45 = math.tanh %44 : vector<8x128xf32>
    %46 = vector.extract_strided_slice %14 {offsets = [40, 0], sizes = [8, 128], strides = [1, 1]} : vector<64x128xf32> to vector<8x128xf32>
    %47 = arith.truncf %45 : vector<8x128xf32> to vector<8x128xbf16>
    %c0_24 = arith.constant 0 : index
    %c0_25 = arith.constant 0 : index
    %48 = vector.load %arg3[%c0_24, %c0_25] : memref<128x128xbf16, #tpu.memory_space<vmem>>, vector<128x128xbf16>
    %cst_26 = arith.constant dense<0.000000e+00> : vector<8x128xf32>
    %49 = tpu.matmul %47, %48, %cst_26 {dimension_numbers = #tpu.dot_dimension_numbers<[1], [0], [0], [1], [0, 0, 1, 1], [], []>} : vector<8x128xbf16>, vector<128x128xbf16>, vector<8x128xf32> -> vector<8x128xf32>
    %50 = arith.addf %46, %49 : vector<8x128xf32>
    %51 = math.tanh %50 : vector<8x128xf32>
    %52 = vector.extract_strided_slice %14 {offsets = [48, 0], sizes = [8, 128], strides = [1, 1]} : vector<64x128xf32> to vector<8x128xf32>
    %53 = arith.truncf %51 : vector<8x128xf32> to vector<8x128xbf16>
    %c0_27 = arith.constant 0 : index
    %c0_28 = arith.constant 0 : index
    %54 = vector.load %arg3[%c0_27, %c0_28] : memref<128x128xbf16, #tpu.memory_space<vmem>>, vector<128x128xbf16>
    %cst_29 = arith.constant dense<0.000000e+00> : vector<8x128xf32>
    %55 = tpu.matmul %53, %54, %cst_29 {dimension_numbers = #tpu.dot_dimension_numbers<[1], [0], [0], [1], [0, 0, 1, 1], [], []>} : vector<8x128xbf16>, vector<128x128xbf16>, vector<8x128xf32> -> vector<8x128xf32>
    %56 = arith.addf %52, %55 : vector<8x128xf32>
    %57 = math.tanh %56 : vector<8x128xf32>
    %58 = vector.extract_strided_slice %14 {offsets = [56, 0], sizes = [8, 128], strides = [1, 1]} : vector<64x128xf32> to vector<8x128xf32>
    %59 = arith.truncf %57 : vector<8x128xf32> to vector<8x128xbf16>
    %c0_30 = arith.constant 0 : index
    %c0_31 = arith.constant 0 : index
    %60 = vector.load %arg3[%c0_30, %c0_31] : memref<128x128xbf16, #tpu.memory_space<vmem>>, vector<128x128xbf16>
    %cst_32 = arith.constant dense<0.000000e+00> : vector<8x128xf32>
    %61 = tpu.matmul %59, %60, %cst_32 {dimension_numbers = #tpu.dot_dimension_numbers<[1], [0], [0], [1], [0, 0, 1, 1], [], []>} : vector<8x128xbf16>, vector<128x128xbf16>, vector<8x128xf32> -> vector<8x128xf32>
    %62 = arith.addf %58, %61 : vector<8x128xf32>
    %63 = math.tanh %62 : vector<8x128xf32>
    %64 = arith.truncf %63 : vector<8x128xf32> to vector<8x128xbf16>
    %c0_33 = arith.constant 0 : index
    %c0_34 = arith.constant 0 : index
    %65 = vector.load %arg5[%c0_33, %c0_34] : memref<128x128xbf16, #tpu.memory_space<vmem>>, vector<128x128xbf16>
    %cst_35 = arith.constant dense<0.000000e+00> : vector<8x128xf32>
    %66 = tpu.matmul %64, %65, %cst_35 {dimension_numbers = #tpu.dot_dimension_numbers<[1], [0], [0], [1], [0, 0, 1, 1], [], []>} : vector<8x128xbf16>, vector<128x128xbf16>, vector<8x128xf32> -> vector<8x128xf32>
    %c0_36 = arith.constant 0 : index
    %c0_37 = arith.constant 0 : index
    %67 = vector.load %arg6[%c0_36, %c0_37] : memref<1x128xf32, #tpu.memory_space<vmem>>, vector<1x128xf32>
    %68 = vector.broadcast %67 : vector<1x128xf32> to vector<8x128xf32>
    %69 = arith.addf %66, %68 : vector<8x128xf32>
    %c0_38 = arith.constant 0 : index
    %c0_39 = arith.constant 0 : index
    %70 = vector.load %arg7[%c0_38, %c0_39] : memref<8x128xf32, #tpu.memory_space<vmem>>, vector<8x128xf32>
    tpu.vector_store %arg7[%c0_38, %c0_39], %69 {strides = array<i32>} : memref<8x128xf32, #tpu.memory_space<vmem>>, vector<8x128xf32>,
    return
  }
}

</mosaic_0001>

<llo_original>
// kernel: _logits_call.1
$region0: #{_logits_call.1}
  #allocation0 [shape = 'u32[]', space=smem, size = 0x4, offset = 0x4, fixed_abs, tag = 'smem constant byte address 0x4 - core index']
  #allocation1 [shape = 'u32[144,128]{1,0:T(1,128)}', space=vmem, size = 0x12000, scoped, tag = 'internal scratch']
  %s0 = inlined_call_operand.vmem [shape: s32[64,1], index: 0, kind: input, shape index: {}]
  %s1 = inlined_call_operand.vmem [shape: bf16[32,128], index: 1, kind: input, shape index: {}]
  %s2 = inlined_call_operand.vmem [shape: bf16[128,128], index: 2, kind: input, shape index: {}]
  %s3 = inlined_call_operand.hbm [shape: bf16[128,128], index: 3, kind: input, shape index: {}]
  %s4 = inlined_call_operand.vmem [shape: f32[1,128], index: 4, kind: input, shape index: {}]
  %s5 = inlined_call_operand.hbm [shape: bf16[128,128], index: 5, kind: input, shape index: {}]
  %s6 = inlined_call_operand.vmem [shape: f32[1,128], index: 6, kind: input, shape index: {}]
  %s7 = inlined_call_operand.vmem [shape: f32[8,128], index: 7, kind: output, shape index: {}]
  %s8 = sld [smem:[#allocation0]]
  $region46: #{_logits_call.1} parent=0
    _
  %s10 = ssub.s32 1, %s8
  %s11 = scalar_select 0, %s10, %s8
  $region1: #{_logits_call.1} parent=0
    #allocation2 [shape = 'u8[32768]{0}', space=vmem, size = 0x8000, scoped, tag = 'input window, operand 3, single buffered']
    #allocation3 [shape = 's32[1]{0}', space=sflag, size = 0x4, scoped, tag = 'scoped memory for _logits_call.1']
    #allocation4 [shape = 'u8[32768]{0}', space=vmem, size = 0x8000, scoped, tag = 'input window, operand 5, single buffered']
    #allocation5 [shape = 's32[1]{0}', space=sflag, size = 0x4, scoped, tag = 'scoped memory for _logits_call.1']
    %12 = vsyncpa [#allocation3], 0
    %13 = vsyncpa [#allocation5], 0
    // Predicated region
    $region2: #{_logits_call.1} parent=1 // pred_check
      _
    $region3: #{_logits_call.1} parent=1 // pred_check_branch
      %15 = sbr.rel (0) target = $region5
    $region4: #{_logits_call.1} parent=1 // pred_region
      _
    $region5: #{_logits_call.1} parent=1 // pred_fallthru
      _
    // Predicated region
    $region6: #{_logits_call.1} parent=1 // pred_check
      _
    $region7: #{_logits_call.1} parent=1 // pred_check_branch
      %17 = sbr.rel (0) target = $region9
    $region8: #{_logits_call.1} parent=1 // pred_region
      _
    $region9: #{_logits_call.1} parent=1 // pred_fallthru
      _
    // Predicated region
    $region10: #{_logits_call.1} parent=1 // pred_check
      _
    $region11: #{_logits_call.1} parent=1 // pred_check_branch
      %19 = sbr.rel (0) target = $region13
    $region12: #{_logits_call.1} parent=1 // pred_region
      _
    $region13: #{_logits_call.1} parent=1 // pred_fallthru
      _
    // Predicated region
    $region14: #{_logits_call.1} parent=1 // pred_check
      _
    $region15: #{_logits_call.1} parent=1 // pred_check_branch
      %21 = sbr.rel (0) target = $region17
    $region16: #{_logits_call.1} parent=1 // pred_region
      %s23 = ssub.s32 1024, 1024
      %24 = vsyncadd [#allocation3], %s23
      %s25 = sshll.u32 [#allocation2], 4
      %s26 = int_to_ptr.vmem [resolvable:$true] %s25
      %31 = dma.hbm_to_vmem [thread:$0]  %s3, 1024, %s26, [#allocation3], 64, 64, 4
    $region17: #{_logits_call.1} parent=1 // pred_fallthru
      _
    // Predicated region
    $region18: #{_logits_call.1} parent=1 // pred_check
      _
    $region19: #{_logits_call.1} parent=1 // pred_check_branch
      %33 = sbr.rel (0) target = $region21
    $region20: #{_logits_call.1} parent=1 // pred_region
      _
    $region21: #{_logits_call.1} parent=1 // pred_fallthru
      _
    // Predicated region
    $region22: #{_logits_call.1} parent=1 // pred_check
      _
    $region23: #{_logits_call.1} parent=1 // pred_check_branch
      %35 = sbr.rel (0) target = $region25
    $region24: #{_logits_call.1} parent=1 // pred_region
      %s37 = ssub.s32 1024, 1024
      %38 = vsyncadd [#allocation5], %s37
      %s39 = sshll.u32 [#allocation4], 4
      %s40 = int_to_ptr.vmem [resolvable:$true] %s39
      %45 = dma.hbm_to_vmem [thread:$0]  %s5, 1024, %s40, [#allocation5], 64, 64, 4
    $region25: #{_logits_call.1} parent=1 // pred_fallthru
      _
    // Predicated region
    $region26: #{_logits_call.1} parent=1 // pred_check
      _
    $region27: #{_logits_call.1} parent=1 // pred_check_branch
      %47 = sbr.rel (0) target = $region29
    $region28: #{_logits_call.1} parent=1 // pred_region
      _
    $region29: #{_logits_call.1} parent=1 // pred_fallthru
      _
    // Predicated region
    $region30: #{_logits_call.1} parent=1 // pred_check
      _
    $region31: #{_logits_call.1} parent=1 // pred_check_branch
      %49 = sbr.rel (0) target = $region33
    $region32: #{_logits_call.1} parent=1 // pred_region
      %50 = dma.done [#allocation3], 1024
    $region33: #{_logits_call.1} parent=1 // pred_fallthru
      _
    // Predicated region
    $region34: #{_logits_call.1} parent=1 // pred_check
      _
    $region35: #{_logits_call.1} parent=1 // pred_check_branch
      %52 = sbr.rel (0) target = $region37
    $region36: #{_logits_call.1} parent=1 // pred_region
      %53 = dma.done [#allocation5], 1024
    $region37: #{_logits_call.1} parent=1 // pred_fallthru
      _
    %v55 = vld [vmem:[%s0] sm:$0xff]
    %v56 = vld [vmem:[%s0 + $0x8] sm:$0xff]
    %v57 = vld [vmem:[%s0 + $0x10] sm:$0xff]
    %v58 = vld [vmem:[%s0 + $0x18] sm:$0xff]
    %v59 = vld [vmem:[%s0 + $0x20] sm:$0xff]
    %v60 = vld [vmem:[%s0 + $0x28] sm:$0xff]
    %v61 = vld [vmem:[%s0 + $0x30] sm:$0xff]
    %v62 = vld [vmem:[%s0 + $0x38] sm:$0xff]
    %v63 = vlaneseq
    %v64 = vand.u32 %v63, 127
    %65 = vset.pattern.permute.xlu0 0
    %66 = vperm.xlu0 %65, %v55
    %v67 = vpop.permute.xlu0 %66
    %68 = vset.pattern.permute.xlu0 0
    %69 = vperm.xlu0 %68, %v56
    %v70 = vpop.permute.xlu0 %69
    %71 = vset.pattern.permute.xlu0 0
    %72 = vperm.xlu0 %71, %v57
    %v73 = vpop.permute.xlu0 %72
    %74 = vset.pattern.permute.xlu0 0
    %75 = vperm.xlu0 %74, %v58
    %v76 = vpop.permute.xlu0 %75
    %77 = vset.pattern.permute.xlu0 0
    %78 = vperm.xlu0 %77, %v59
    %v79 = vpop.permute.xlu0 %78
    %80 = vset.pattern.permute.xlu0 0
    %81 = vperm.xlu0 %80, %v60
    %v82 = vpop.permute.xlu0 %81
    %83 = vset.pattern.permute.xlu0 0
    %84 = vperm.xlu0 %83, %v61
    %v85 = vpop.permute.xlu0 %84
    %86 = vset.pattern.permute.xlu0 0
    %87 = vperm.xlu0 %86, %v62
    %v88 = vpop.permute.xlu0 %87
    %vm89 = vcmp.eq.s32.totalorder %v67, %v64
    %vm90 = vcmp.eq.s32.totalorder %v70, %v64
    %vm91 = vcmp.eq.s32.totalorder %v73, %v64
    %vm92 = vcmp.eq.s32.totalorder %v76, %v64
    %vm93 = vcmp.eq.s32.totalorder %v79, %v64
    %vm94 = vcmp.eq.s32.totalorder %v82, %v64
    %vm95 = vcmp.eq.s32.totalorder %v85, %v64
    %vm96 = vcmp.eq.s32.totalorder %v88, %v64
    %v97 = vsel %vm89, 1, 0
    %v98 = vsel %vm90, 1, 0
    %v99 = vsel %vm91, 1, 0
    %v100 = vsel %vm92, 1, 0
    %v101 = vsel %vm93, 1, 0
    %v102 = vsel %vm94, 1, 0
    %v103 = vsel %vm95, 1, 0
    %v104 = vsel %vm96, 1, 0
    %v105 = vcvt.s32.f32 %v97
    %v106 = vcvt.s32.f32 %v98
    %v107 = vcvt.s32.f32 %v99
    %v108 = vcvt.s32.f32 %v100
    %v109 = vcvt.s32.f32 %v101
    %v110 = vcvt.s32.f32 %v102
    %v111 = vcvt.s32.f32 %v103
    %v112 = vcvt.s32.f32 %v104
    %v113 = vpack.c.bf16 %v106, %v105
    %v114 = vpack.c.bf16 %v108, %v107
    %v115 = vpack.c.bf16 %v110, %v109
    %v116 = vpack.c.bf16 %v112, %v111
    %v117 = vld [vmem:[%s1] sm:$0xf]
    %v118 = vld [vmem:[%s1 + $0x4] sm:$0xf]
    %v119 = vld [vmem:[%s1 + $0x8] sm:$0xf]
    %v120 = vld [vmem:[%s1 + $0xc] sm:$0xf]
    %v125 = vunpack.c.l.b16 %v117
    %v126 = vunpack.c.l.b16 %v118
    %v127 = vunpack.c.l.b16 %v119
    %v128 = vunpack.c.l.b16 %v120
    %v129 = vpack.c.b16 %v126, %v125
    %v130 = vpack.c.b16 %v128, %v127
    %vm133 = vcmask 261120
    %v135 = vsel %vm133, %v113, 0
    %v138 = vsel %vm133, %v114, 0
    %v141 = vsel %vm133, %v115, 0
    %v144 = vsel %vm133, %v116, 0
    %146 = vmatprep.subr.bf16.mxu0 0
    %147 = vmatpush1.bf16.msra.mxu0 0
    %148 = vmatprep.subr.bf16.mxu0 0
    %149 = vmatpush1.bf16.msra.mxu0 0
    %150 = vmatprep.subr.bf16.mxu0 0
    %151 = vmatpush1.bf16.msra.mxu0 0
    %152 = vmatprep.subr.bf16.mxu0 0
    %153 = vmatpush1.bf16.msra.mxu0 0
    %154 = vmatprep.subr.bf16.mxu0 0
    %155 = vmatpush1.bf16.msra.mxu0 0
    %156 = vmatprep.subr.bf16.mxu0 0
    %157 = vmatpush1.bf16.msra.mxu0 0
    %158 = vmatprep.subr.bf16.mxu0 0
    %159 = vmatpush1.bf16.msra.mxu0 %v130
    %160 = vmatprep.subr.bf16.mxu0 0
    %161 = vmatpush1.bf16.msra.mxu0 %v129
    %162 = vmatprep.subr.bf16.mxu0 0
    %163 = vmatpush2.bf16.msra.mxu0 0
    %164 = vmatprep.subr.bf16.mxu0 0
    %165 = vmatpush2.bf16.msra.mxu0 0
    %166 = vmatprep.subr.bf16.mxu0 0
    %167 = vmatpush2.bf16.msra.mxu0 0
    %168 = vmatprep.subr.bf16.mxu0 0
    %169 = vmatpush2.bf16.msra.mxu0 0
    %170 = vmatprep.subr.bf16.mxu0 0
    %171 = vmatpush2.bf16.msra.mxu0 0
    %172 = vmatprep.subr.bf16.mxu0 0
    %173 = vmatpush2.bf16.msra.mxu0 0
    %174 = vmatprep.subr.bf16.mxu0 0
    %175 = vmatpush2.bf16.msra.mxu0 0
    %176 = vmatprep.subr.bf16.mxu0 0
    %177 = vmatpush2.bf16.msra.mxu0 0
    %178 = vmatprep.mubr.bf16.mxu0 0
    %179 = vmatmul.mubr.bf16.gmra.mxu0 %v135
    %v180 = vpop.f32.mrf.mxu0
    %v181 = vadd.f32 0.0, %v180
    %v182 = vpop.f32.mrf.mxu0
    %v183 = vpop.f32.mrf.mxu0
    %v184 = vadd.f32 0.0, %v183
    %v185 = vpop.f32.mrf.mxu0
    %186 = vmatprep.mubr.bf16.mxu0 0
    %187 = vmatmul.mubr.bf16.gmra.mxu0 %v138
    %v188 = vpop.f32.mrf.mxu0
    %v189 = vadd.f32 0.0, %v188
    %v190 = vpop.f32.mrf.mxu0
    %v191 = vpop.f32.mrf.mxu0
    %v192 = vadd.f32 0.0, %v191
    %v193 = vpop.f32.mrf.mxu0
    %194 = vmatprep.mubr.bf16.mxu0 0
    %195 = vmatmul.mubr.bf16.gmra.mxu0 %v141
    %v196 = vpop.f32.mrf.mxu0
    %v197 = vadd.f32 0.0, %v196
    %v198 = vpop.f32.mrf.mxu0
    %v199 = vpop.f32.mrf.mxu0
    %v200 = vadd.f32 0.0, %v199
    %v201 = vpop.f32.mrf.mxu0
    %202 = vmatprep.mubr.bf16.mxu0 0
    %203 = vmatmul.mubr.bf16.gmra.mxu0 %v144
    %v204 = vpop.f32.mrf.mxu0
    %v205 = vadd.f32 0.0, %v204
    %v206 = vpop.f32.mrf.mxu0
    %v207 = vpop.f32.mrf.mxu0
    %v208 = vadd.f32 0.0, %v207
    %v209 = vpop.f32.mrf.mxu0
    %210 = vdwg.mxu0
    %v211 = vpack.c.bf16 %v184, %v181
    %v212 = vpack.c.bf16 %v192, %v189
    %v213 = vpack.c.bf16 %v200, %v197
    %v214 = vpack.c.bf16 %v208, %v205
    %v215 = vld [vmem:[%s2] sm:$0xf]
    %v216 = vld [vmem:[%s2 + $0x4] sm:$0xf]
    %v217 = vld [vmem:[%s2 + $0x8] sm:$0xf]
    %v218 = vld [vmem:[%s2 + $0xc] sm:$0xf]
    %v219 = vld [vmem:[%s2 + $0x10] sm:$0xf]
    %v220 = vld [vmem:[%s2 + $0x14] sm:$0xf]
    %v221 = vld [vmem:[%s2 + $0x18] sm:$0xf]
    %v222 = vld [vmem:[%s2 + $0x1c] sm:$0xf]
    %v223 = vld [vmem:[%s2 + $0x20] sm:$0xf]
    %v224 = vld [vmem:[%s2 + $0x24] sm:$0xf]
    %v225 = vld [vmem:[%s2 + $0x28] sm:$0xf]
    %v226 = vld [vmem:[%s2 + $0x2c] sm:$0xf]
    %v227 = vld [vmem:[%s2 + $0x30] sm:$0xf]
    %v228 = vld [vmem:[%s2 + $0x34] sm:$0xf]
    %v229 = vld [vmem:[%s2 + $0x38] sm:$0xf]
    %v230 = vld [vmem:[%s2 + $0x3c] sm:$0xf]
    %v231 = vld [vmem:[%s4] sm:$0x1]
    %v233 = vlaneseq
    %v234 = vshrl.u32 %v233, 7
    %v235 = vsub.s32 0, %v234
    %v236 = vrot.slane %v231, %v235
    %v254 = vunpack.c.l.b16 %v215
    %v255 = vunpack.c.l.b16 %v216
    %v256 = vunpack.c.l.b16 %v217
    %v257 = vunpack.c.l.b16 %v218
    %v258 = vunpack.c.l.b16 %v219
    %v259 = vunpack.c.l.b16 %v220
    %v260 = vunpack.c.l.b16 %v221
    %v261 = vunpack.c.l.b16 %v222
    %v262 = vunpack.c.l.b16 %v223
    %v263 = vunpack.c.l.b16 %v224
    %v264 = vunpack.c.l.b16 %v225
    %v265 = vunpack.c.l.b16 %v226
    %v266 = vunpack.c.l.b16 %v227
    %v267 = vunpack.c.l.b16 %v228
    %v268 = vunpack.c.l.b16 %v229
    %v269 = vunpack.c.l.b16 %v230
    %v270 = vpack.c.b16 %v255, %v254
    %v271 = vpack.c.b16 %v257, %v256
    %v272 = vpack.c.b16 %v259, %v258
    %v273 = vpack.c.b16 %v261, %v260
    %v274 = vpack.c.b16 %v263, %v262
    %v275 = vpack.c.b16 %v265, %v264
    %v276 = vpack.c.b16 %v267, %v266
    %v277 = vpack.c.b16 %v269, %v268
    %286 = vmatprep.subr.bf16.mxu0 0
    %287 = vmatpush1.bf16.msra.mxu0 %v277
    %288 = vmatprep.subr.bf16.mxu0 0
    %289 = vmatpush1.bf16.msra.mxu0 %v276
    %290 = vmatprep.subr.bf16.mxu0 0
    %291 = vmatpush1.bf16.msra.mxu0 %v275
    %292 = vmatprep.subr.bf16.mxu0 0
    %293 = vmatpush1.bf16.msra.mxu0 %v274
    %294 = vmatprep.subr.bf16.mxu0 0
    %295 = vmatpush1.bf16.msra.mxu0 %v273
    %296 = vmatprep.subr.bf16.mxu0 0
    %297 = vmatpush1.bf16.msra.mxu0 %v272
    %298 = vmatprep.subr.bf16.mxu0 0
    %299 = vmatpush1.bf16.msra.mxu0 %v271
    %300 = vmatprep.subr.bf16.mxu0 0
    %301 = vmatpush1.bf16.msra.mxu0 %v270
    %302 = vmatprep.subr.bf16.mxu0 0
    %303 = vmatpush2.bf16.msra.mxu0 0
    %304 = vmatprep.subr.bf16.mxu0 0
    %305 = vmatpush2.bf16.msra.mxu0 0
    %306 = vmatprep.subr.bf16.mxu0 0
    %307 = vmatpush2.bf16.msra.mxu0 0
    %308 = vmatprep.subr.bf16.mxu0 0
    %309 = vmatpush2.bf16.msra.mxu0 0
    %310 = vmatprep.subr.bf16.mxu0 0
    %311 = vmatpush2.bf16.msra.mxu0 0
    %312 = vmatprep.subr.bf16.mxu0 0
    %313 = vmatpush2.bf16.msra.mxu0 0
    %314 = vmatprep.subr.bf16.mxu0 0
    %315 = vmatpush2.bf16.msra.mxu0 0
    %316 = vmatprep.subr.bf16.mxu0 0
    %317 = vmatpush2.bf16.msra.mxu0 0
    %318 = vmatprep.mubr.bf16.mxu0 0
    %319 = vmatmul.mubr.bf16.gmra.mxu0 %v211
    %v320 = vpop.f32.mrf.mxu0
    %v321 = vadd.f32 %v236, %v320
    %v322 = vpop.f32.mrf.mxu0
    %v323 = vpop.f32.mrf.mxu0
    %v324 = vadd.f32 %v236, %v323
    %v325 = vpop.f32.mrf.mxu0
    %326 = vmatprep.mubr.bf16.mxu0 0
    %327 = vmatmul.mubr.bf16.gmra.mxu0 %v212
    %v328 = vpop.f32.mrf.mxu0
    %v329 = vadd.f32 %v236, %v328
    %v330 = vpop.f32.mrf.mxu0
    %v331 = vpop.f32.mrf.mxu0
    %v332 = vadd.f32 %v236, %v331
    %v333 = vpop.f32.mrf.mxu0
    %334 = vmatprep.mubr.bf16.mxu0 0
    %335 = vmatmul.mubr.bf16.gmra.mxu0 %v213
    %v336 = vpop.f32.mrf.mxu0
    %v337 = vadd.f32 %v236, %v336
    %v338 = vpop.f32.mrf.mxu0
    %v339 = vpop.f32.mrf.mxu0
    %v340 = vadd.f32 %v236, %v339
    %v341 = vpop.f32.mrf.mxu0
    %342 = vmatprep.mubr.bf16.mxu0 0
    %343 = vmatmul.mubr.bf16.gmra.mxu0 %v214
    %v344 = vpop.f32.mrf.mxu0
    %v345 = vadd.f32 %v236, %v344
    %v346 = vpop.f32.mrf.mxu0
    %v347 = vpop.f32.mrf.mxu0
    %v348 = vadd.f32 %v236, %v347
    %v349 = vpop.f32.mrf.mxu0
    %350 = vdwg.mxu0
    %v351 = vld [vmem:[#allocation2] sm:$0xf]
    %v352 = vld [vmem:[#allocation2 + $0x4] sm:$0xf]
    %v353 = vld [vmem:[#allocation2 + $0x8] sm:$0xf]
    %v354 = vld [vmem:[#allocation2 + $0xc] sm:$0xf]
    %v355 = vld [vmem:[#allocation2 + $0x10] sm:$0xf]
    %v356 = vld [vmem:[#allocation2 + $0x14] sm:$0xf]
    %v357 = vld [vmem:[#allocation2 + $0x18] sm:$0xf]
    %v358 = vld [vmem:[#allocation2 + $0x1c] sm:$0xf]
    %v359 = vld [vmem:[#allocation2 + $0x20] sm:$0xf]
    %v360 = vld [vmem:[#allocation2 + $0x24] sm:$0xf]
    %v361 = vld [vmem:[#allocation2 + $0x28] sm:$0xf]
    %v362 = vld [vmem:[#allocation2 + $0x2c] sm:$0xf]
    %v363 = vld [vmem:[#allocation2 + $0x30] sm:$0xf]
    %v364 = vld [vmem:[#allocation2 + $0x34] sm:$0xf]
    %v365 = vld [vmem:[#allocation2 + $0x38] sm:$0xf]
    %v366 = vld [vmem:[#allocation2 + $0x3c] sm:$0xf]
    %v383 = vunpack.c.l.b16 %v351
    %v384 = vunpack.c.l.b16 %v352
    %v385 = vunpack.c.l.b16 %v353
    %v386 = vunpack.c.l.b16 %v354
    %v387 = vunpack.c.l.b16 %v355
    %v388 = vunpack.c.l.b16 %v356
    %v389 = vunpack.c.l.b16 %v357
    %v390 = vunpack.c.l.b16 %v358
    %v391 = vunpack.c.l.b16 %v359
    %v392 = vunpack.c.l.b16 %v360
    %v393 = vunpack.c.l.b16 %v361
    %v394 = vunpack.c.l.b16 %v362
    %v395 = vunpack.c.l.b16 %v363
    %v396 = vunpack.c.l.b16 %v364
    %v397 = vunpack.c.l.b16 %v365
    %v398 = vunpack.c.l.b16 %v366
    %v399 = vpack.c.b16 %v384, %v383
    %v400 = vpack.c.b16 %v386, %v385
    %v401 = vpack.c.b16 %v388, %v387
    %v402 = vpack.c.b16 %v390, %v389
    %v403 = vpack.c.b16 %v392, %v391
    %v404 = vpack.c.b16 %v394, %v393
    %v405 = vpack.c.b16 %v396, %v395
    %v406 = vpack.c.b16 %v398, %v397
    %415 = vmatprep.subr.bf16.mxu0 0
    %416 = vmatpush1.bf16.msra.mxu0 %v406
    %417 = vmatprep.subr.bf16.mxu0 0
    %418 = vmatpush1.bf16.msra.mxu0 %v405
    %419 = vmatprep.subr.bf16.mxu0 0
    %420 = vmatpush1.bf16.msra.mxu0 %v404
    %421 = vmatprep.subr.bf16.mxu0 0
    %422 = vmatpush1.bf16.msra.mxu0 %v403
    %423 = vmatprep.subr.bf16.mxu0 0
    %424 = vmatpush1.bf16.msra.mxu0 %v402
    %425 = vmatprep.subr.bf16.mxu0 0
    %426 = vmatpush1.bf16.msra.mxu0 %v401
    %427 = vmatprep.subr.bf16.mxu0 0
    %428 = vmatpush1.bf16.msra.mxu0 %v400
    %429 = vmatprep.subr.bf16.mxu0 0
    %430 = vmatpush1.bf16.msra.mxu0 %v399
    %431 = vmatprep.subr.bf16.mxu0 0
    %432 = vmatpush2.bf16.msra.mxu0 0
    %433 = vmatprep.subr.bf16.mxu0 0
    %434 = vmatpush2.bf16.msra.mxu0 0
    %435 = vmatprep.subr.bf16.mxu0 0
    %436 = vmatpush2.bf16.msra.mxu0 0
    %437 = vmatprep.subr.bf16.mxu0 0
    %438 = vmatpush2.bf16.msra.mxu0 0
    %439 = vmatprep.subr.bf16.mxu0 0
    %440 = vmatpush2.bf16.msra.mxu0 0
    %441 = vmatprep.subr.bf16.mxu0 0
    %442 = vmatpush2.bf16.msra.mxu0 0
    %443 = vmatprep.subr.bf16.mxu0 0
    %444 = vmatpush2.bf16.msra.mxu0 0
    %445 = vmatprep.subr.bf16.mxu0 0
    %446 = vmatpush2.bf16.msra.mxu0 0
    %447 = vmatprep.mubr.bf16.mxu0 0
    %448 = vmatmul.mubr.bf16.gmra.mxu0 0
    %v449 = vpop.f32.mrf.mxu0
    %v450 = vadd.f32 0.0, %v449
    %v451 = vpop.f32.mrf.mxu0
    %v452 = vpop.f32.mrf.mxu0
    %v453 = vpop.f32.mrf.mxu0
    %454 = vdwg.mxu0
    %v455 = vadd.f32 %v321, %v450
    %v456 = vtanh.pop %v455
    %v457 = vpack.c.bf16 %v456, %v456
    %458 = vmatprep.subr.bf16.mxu0 0
    %459 = vmatpush1.bf16.msra.mxu0 %v406
    %460 = vmatprep.subr.bf16.mxu0 0
    %461 = vmatpush1.bf16.msra.mxu0 %v405
    %462 = vmatprep.subr.bf16.mxu0 0
    %463 = vmatpush1.bf16.msra.mxu0 %v404
    %464 = vmatprep.subr.bf16.mxu0 0
    %465 = vmatpush1.bf16.msra.mxu0 %v403
    %466 = vmatprep.subr.bf16.mxu0 0
    %467 = vmatpush1.bf16.msra.mxu0 %v402
    %468 = vmatprep.subr.bf16.mxu0 0
    %469 = vmatpush1.bf16.msra.mxu0 %v401
    %470 = vmatprep.subr.bf16.mxu0 0
    %471 = vmatpush1.bf16.msra.mxu0 %v400
    %472 = vmatprep.subr.bf16.mxu0 0
    %473 = vmatpush1.bf16.msra.mxu0 %v399
    %474 = vmatprep.subr.bf16.mxu0 0
    %475 = vmatpush2.bf16.msra.mxu0 0
    %476 = vmatprep.subr.bf16.mxu0 0
    %477 = vmatpush2.bf16.msra.mxu0 0
    %478 = vmatprep.subr.bf16.mxu0 0
    %479 = vmatpush2.bf16.msra.mxu0 0
    %480 = vmatprep.subr.bf16.mxu0 0
    %481 = vmatpush2.bf16.msra.mxu0 0
    %482 = vmatprep.subr.bf16.mxu0 0
    %483 = vmatpush2.bf16.msra.mxu0 0
    %484 = vmatprep.subr.bf16.mxu0 0
    %485 = vmatpush2.bf16.msra.mxu0 0
    %486 = vmatprep.subr.bf16.mxu0 0
    %487 = vmatpush2.bf16.msra.mxu0 0
    %488 = vmatprep.subr.bf16.mxu0 0
    %489 = vmatpush2.bf16.msra.mxu0 0
    %490 = vmatprep.mubr.bf16.mxu0 0
    %491 = vmatmul.mubr.bf16.gmra.mxu0 %v457
    %v492 = vpop.f32.mrf.mxu0
    %v493 = vadd.f32 0.0, %v492
    %v494 = vpop.f32.mrf.mxu0
    %v495 = vpop.f32.mrf.mxu0
    %v496 = vpop.f32.mrf.mxu0
    %497 = vdwg.mxu0
    %v498 = vadd.f32 %v324, %v493
    %v499 = vtanh.pop %v498
    %v500 = vpack.c.bf16 %v499, %v499
    %501 = vmatprep.subr.bf16.mxu0 0
    %502 = vmatpush1.bf16.msra.mxu0 %v406
    %503 = vmatprep.subr.bf16.mxu0 0
    %504 = vmatpush1.bf16.msra.mxu0 %v405
    %505 = vmatprep.subr.bf16.mxu0 0
    %506 = vmatpush1.bf16.msra.mxu0 %v404
    %507 = vmatprep.subr.bf16.mxu0 0
    %508 = vmatpush1.bf16.msra.mxu0 %v403
    %509 = vmatprep.subr.bf16.mxu0 0
    %510 = vmatpush1.bf16.msra.mxu0 %v402
    %511 = vmatprep.subr.bf16.mxu0 0
    %512 = vmatpush1.bf16.msra.mxu0 %v401
    %513 = vmatprep.subr.bf16.mxu0 0
    %514 = vmatpush1.bf16.msra.mxu0 %v400
    %515 = vmatprep.subr.bf16.mxu0 0
    %516 = vmatpush1.bf16.msra.mxu0 %v399
    %517 = vmatprep.subr.bf16.mxu0 0
    %518 = vmatpush2.bf16.msra.mxu0 0
    %519 = vmatprep.subr.bf16.mxu0 0
    %520 = vmatpush2.bf16.msra.mxu0 0
    %521 = vmatprep.subr.bf16.mxu0 0
    %522 = vmatpush2.bf16.msra.mxu0 0
    %523 = vmatprep.subr.bf16.mxu0 0
    %524 = vmatpush2.bf16.msra.mxu0 0
    %525 = vmatprep.subr.bf16.mxu0 0
    %526 = vmatpush2.bf16.msra.mxu0 0
    %527 = vmatprep.subr.bf16.mxu0 0
    %528 = vmatpush2.bf16.msra.mxu0 0
    %529 = vmatprep.subr.bf16.mxu0 0
    %530 = vmatpush2.bf16.msra.mxu0 0
    %531 = vmatprep.subr.bf16.mxu0 0
    %532 = vmatpush2.bf16.msra.mxu0 0
    %533 = vmatprep.mubr.bf16.mxu0 0
    %534 = vmatmul.mubr.bf16.gmra.mxu0 %v500
    %v535 = vpop.f32.mrf.mxu0
    %v536 = vadd.f32 0.0, %v535
    %v537 = vpop.f32.mrf.mxu0
    %v538 = vpop.f32.mrf.mxu0
    %v539 = vpop.f32.mrf.mxu0
    %540 = vdwg.mxu0
    %v541 = vadd.f32 %v329, %v536
    %v542 = vtanh.pop %v541
    %v543 = vpack.c.bf16 %v542, %v542
    %544 = vmatprep.subr.bf16.mxu0 0
    %545 = vmatpush1.bf16.msra.mxu0 %v406
    %546 = vmatprep.subr.bf16.mxu0 0
    %547 = vmatpush1.bf16.msra.mxu0 %v405
    %548 = vmatprep.subr.bf16.mxu0 0
    %549 = vmatpush1.bf16.msra.mxu0 %v404
    %550 = vmatprep.subr.bf16.mxu0 0
    %551 = vmatpush1.bf16.msra.mxu0 %v403
    %552 = vmatprep.subr.bf16.mxu0 0
    %553 = vmatpush1.bf16.msra.mxu0 %v402
    %554 = vmatprep.subr.bf16.mxu0 0
    %555 = vmatpush1.bf16.msra.mxu0 %v401
    %556 = vmatprep.subr.bf16.mxu0 0
    %557 = vmatpush1.bf16.msra.mxu0 %v400
    %558 = vmatprep.subr.bf16.mxu0 0
    %559 = vmatpush1.bf16.msra.mxu0 %v399
    %560 = vmatprep.subr.bf16.mxu0 0
    %561 = vmatpush2.bf16.msra.mxu0 0
    %562 = vmatprep.subr.bf16.mxu0 0
    %563 = vmatpush2.bf16.msra.mxu0 0
    %564 = vmatprep.subr.bf16.mxu0 0
    %565 = vmatpush2.bf16.msra.mxu0 0
    %566 = vmatprep.subr.bf16.mxu0 0
    %567 = vmatpush2.bf16.msra.mxu0 0
    %568 = vmatprep.subr.bf16.mxu0 0
    %569 = vmatpush2.bf16.msra.mxu0 0
    %570 = vmatprep.subr.bf16.mxu0 0
    %571 = vmatpush2.bf16.msra.mxu0 0
    %572 = vmatprep.subr.bf16.mxu0 0
    %573 = vmatpush2.bf16.msra.mxu0 0
    %574 = vmatprep.subr.bf16.mxu0 0
    %575 = vmatpush2.bf16.msra.mxu0 0
    %576 = vmatprep.mubr.bf16.mxu0 0
    %577 = vmatmul.mubr.bf16.gmra.mxu0 %v543
    %v578 = vpop.f32.mrf.mxu0
    %v579 = vadd.f32 0.0, %v578
    %v580 = vpop.f32.mrf.mxu0
    %v581 = vpop.f32.mrf.mxu0
    %v582 = vpop.f32.mrf.mxu0
    %583 = vdwg.mxu0
    %v584 = vadd.f32 %v332, %v579
    %v585 = vtanh.pop %v584
    %v586 = vpack.c.bf16 %v585, %v585
    %587 = vmatprep.subr.bf16.mxu0 0
    %588 = vmatpush1.bf16.msra.mxu0 %v406
    %589 = vmatprep.subr.bf16.mxu0 0
    %590 = vmatpush1.bf16.msra.mxu0 %v405
    %591 = vmatprep.subr.bf16.mxu0 0
    %592 = vmatpush1.bf16.msra.mxu0 %v404
    %593 = vmatprep.subr.bf16.mxu0 0
    %594 = vmatpush1.bf16.msra.mxu0 %v403
    %595 = vmatprep.subr.bf16.mxu0 0
    %596 = vmatpush1.bf16.msra.mxu0 %v402
    %597 = vmatprep.subr.bf16.mxu0 0
    %598 = vmatpush1.bf16.msra.mxu0 %v401
    %599 = vmatprep.subr.bf16.mxu0 0
    %600 = vmatpush1.bf16.msra.mxu0 %v400
    %601 = vmatprep.subr.bf16.mxu0 0
    %602 = vmatpush1.bf16.msra.mxu0 %v399
    %603 = vmatprep.subr.bf16.mxu0 0
    %604 = vmatpush2.bf16.msra.mxu0 0
    %605 = vmatprep.subr.bf16.mxu0 0
    %606 = vmatpush2.bf16.msra.mxu0 0
    %607 = vmatprep.subr.bf16.mxu0 0
    %608 = vmatpush2.bf16.msra.mxu0 0
    %609 = vmatprep.subr.bf16.mxu0 0
    %610 = vmatpush2.bf16.msra.mxu0 0
    %611 = vmatprep.subr.bf16.mxu0 0
    %612 = vmatpush2.bf16.msra.mxu0 0
    %613 = vmatprep.subr.bf16.mxu0 0
    %614 = vmatpush2.bf16.msra.mxu0 0
    %615 = vmatprep.subr.bf16.mxu0 0
    %616 = vmatpush2.bf16.msra.mxu0 0
    %617 = vmatprep.subr.bf16.mxu0 0
    %618 = vmatpush2.bf16.msra.mxu0 0
    %619 = vmatprep.mubr.bf16.mxu0 0
    %620 = vmatmul.mubr.bf16.gmra.mxu0 %v586
    %v621 = vpop.f32.mrf.mxu0
    %v622 = vadd.f32 0.0, %v621
    %v623 = vpop.f32.mrf.mxu0
    %v624 = vpop.f32.mrf.mxu0
    %v625 = vpop.f32.mrf.mxu0
    %626 = vdwg.mxu0
    %v627 = vadd.f32 %v337, %v622
    %v628 = vtanh.pop %v627
    %v629 = vpack.c.bf16 %v628, %v628
    %630 = vmatprep.subr.bf16.mxu0 0
    %631 = vmatpush1.bf16.msra.mxu0 %v406
    %632 = vmatprep.subr.bf16.mxu0 0
    %633 = vmatpush1.bf16.msra.mxu0 %v405
    %634 = vmatprep.subr.bf16.mxu0 0
    %635 = vmatpush1.bf16.msra.mxu0 %v404
    %636 = vmatprep.subr.bf16.mxu0 0
    %637 = vmatpush1.bf16.msra.mxu0 %v403
    %638 = vmatprep.subr.bf16.mxu0 0
    %639 = vmatpush1.bf16.msra.mxu0 %v402
    %640 = vmatprep.subr.bf16.mxu0 0
    %641 = vmatpush1.bf16.msra.mxu0 %v401
    %642 = vmatprep.subr.bf16.mxu0 0
    %643 = vmatpush1.bf16.msra.mxu0 %v400
    %644 = vmatprep.subr.bf16.mxu0 0
    %645 = vmatpush1.bf16.msra.mxu0 %v399
    %646 = vmatprep.subr.bf16.mxu0 0
    %647 = vmatpush2.bf16.msra.mxu0 0
    %648 = vmatprep.subr.bf16.mxu0 0
    %649 = vmatpush2.bf16.msra.mxu0 0
    %650 = vmatprep.subr.bf16.mxu0 0
    %651 = vmatpush2.bf16.msra.mxu0 0
    %652 = vmatprep.subr.bf16.mxu0 0
    %653 = vmatpush2.bf16.msra.mxu0 0
    %654 = vmatprep.subr.bf16.mxu0 0
    %655 = vmatpush2.bf16.msra.mxu0 0
    %656 = vmatprep.subr.bf16.mxu0 0
    %657 = vmatpush2.bf16.msra.mxu0 0
    %658 = vmatprep.subr.bf16.mxu0 0
    %659 = vmatpush2.bf16.msra.mxu0 0
    %660 = vmatprep.subr.bf16.mxu0 0
    %661 = vmatpush2.bf16.msra.mxu0 0
    %662 = vmatprep.mubr.bf16.mxu0 0
    %663 = vmatmul.mubr.bf16.gmra.mxu0 %v629
    %v664 = vpop.f32.mrf.mxu0
    %v665 = vadd.f32 0.0, %v664
    %v666 = vpop.f32.mrf.mxu0
    %v667 = vpop.f32.mrf.mxu0
    %v668 = vpop.f32.mrf.mxu0
    %669 = vdwg.mxu0
    %v670 = vadd.f32 %v340, %v665
    %v671 = vtanh.pop %v670
    %v672 = vpack.c.bf16 %v671, %v671
    %673 = vmatprep.subr.bf16.mxu0 0
    %674 = vmatpush1.bf16.msra.mxu0 %v406
    %675 = vmatprep.subr.bf16.mxu0 0
    %676 = vmatpush1.bf16.msra.mxu0 %v405
    %677 = vmatprep.subr.bf16.mxu0 0
    %678 = vmatpush1.bf16.msra.mxu0 %v404
    %679 = vmatprep.subr.bf16.mxu0 0
    %680 = vmatpush1.bf16.msra.mxu0 %v403
    %681 = vmatprep.subr.bf16.mxu0 0
    %682 = vmatpush1.bf16.msra.mxu0 %v402
    %683 = vmatprep.subr.bf16.mxu0 0
    %684 = vmatpush1.bf16.msra.mxu0 %v401
    %685 = vmatprep.subr.bf16.mxu0 0
    %686 = vmatpush1.bf16.msra.mxu0 %v400
    %687 = vmatprep.subr.bf16.mxu0 0
    %688 = vmatpush1.bf16.msra.mxu0 %v399
    %689 = vmatprep.subr.bf16.mxu0 0
    %690 = vmatpush2.bf16.msra.mxu0 0
    %691 = vmatprep.subr.bf16.mxu0 0
    %692 = vmatpush2.bf16.msra.mxu0 0
    %693 = vmatprep.subr.bf16.mxu0 0
    %694 = vmatpush2.bf16.msra.mxu0 0
    %695 = vmatprep.subr.bf16.mxu0 0
    %696 = vmatpush2.bf16.msra.mxu0 0
    %697 = vmatprep.subr.bf16.mxu0 0
    %698 = vmatpush2.bf16.msra.mxu0 0
    %699 = vmatprep.subr.bf16.mxu0 0
    %700 = vmatpush2.bf16.msra.mxu0 0
    %701 = vmatprep.subr.bf16.mxu0 0
    %702 = vmatpush2.bf16.msra.mxu0 0
    %703 = vmatprep.subr.bf16.mxu0 0
    %704 = vmatpush2.bf16.msra.mxu0 0
    %705 = vmatprep.mubr.bf16.mxu0 0
    %706 = vmatmul.mubr.bf16.gmra.mxu0 %v672
    %v707 = vpop.f32.mrf.mxu0
    %v708 = vadd.f32 0.0, %v707
    %v709 = vpop.f32.mrf.mxu0
    %v710 = vpop.f32.mrf.mxu0
    %v711 = vpop.f32.mrf.mxu0
    %712 = vdwg.mxu0
    %v713 = vadd.f32 %v345, %v708
    %v714 = vtanh.pop %v713
    %v715 = vpack.c.bf16 %v714, %v714
    %716 = vmatprep.subr.bf16.mxu0 0
    %717 = vmatpush1.bf16.msra.mxu0 %v406
    %718 = vmatprep.subr.bf16.mxu0 0
    %719 = vmatpush1.bf16.msra.mxu0 %v405
    %720 = vmatprep.subr.bf16.mxu0 0
    %721 = vmatpush1.bf16.msra.mxu0 %v404
    %722 = vmatprep.subr.bf16.mxu0 0
    %723 = vmatpush1.bf16.msra.mxu0 %v403
    %724 = vmatprep.subr.bf16.mxu0 0
    %725 = vmatpush1.bf16.msra.mxu0 %v402
    %726 = vmatprep.subr.bf16.mxu0 0
    %727 = vmatpush1.bf16.msra.mxu0 %v401
    %728 = vmatprep.subr.bf16.mxu0 0
    %729 = vmatpush1.bf16.msra.mxu0 %v400
    %730 = vmatprep.subr.bf16.mxu0 0
    %731 = vmatpush1.bf16.msra.mxu0 %v399
    %732 = vmatprep.subr.bf16.mxu0 0
    %733 = vmatpush2.bf16.msra.mxu0 0
    %734 = vmatprep.subr.bf16.mxu0 0
    %735 = vmatpush2.bf16.msra.mxu0 0
    %736 = vmatprep.subr.bf16.mxu0 0
    %737 = vmatpush2.bf16.msra.mxu0 0
    %738 = vmatprep.subr.bf16.mxu0 0
    %739 = vmatpush2.bf16.msra.mxu0 0
    %740 = vmatprep.subr.bf16.mxu0 0
    %741 = vmatpush2.bf16.msra.mxu0 0
    %742 = vmatprep.subr.bf16.mxu0 0
    %743 = vmatpush2.bf16.msra.mxu0 0
    %744 = vmatprep.subr.bf16.mxu0 0
    %745 = vmatpush2.bf16.msra.mxu0 0
    %746 = vmatprep.subr.bf16.mxu0 0
    %747 = vmatpush2.bf16.msra.mxu0 0
    %748 = vmatprep.mubr.bf16.mxu0 0
    %749 = vmatmul.mubr.bf16.gmra.mxu0 %v715
    %v750 = vpop.f32.mrf.mxu0
    %v751 = vadd.f32 0.0, %v750
    %v752 = vpop.f32.mrf.mxu0
    %v753 = vpop.f32.mrf.mxu0
    %v754 = vpop.f32.mrf.mxu0
    %755 = vdwg.mxu0
    %v756 = vadd.f32 %v348, %v751
    %v757 = vtanh.pop %v756
    %v758 = vpack.c.bf16 %v757, %v757
    %v759 = vld [vmem:[#allocation4] sm:$0xf]
    %v760 = vld [vmem:[#allocation4 + $0x4] sm:$0xf]
    %v761 = vld [vmem:[#allocation4 + $0x8] sm:$0xf]
    %v762 = vld [vmem:[#allocation4 + $0xc] sm:$0xf]
    %v763 = vld [vmem:[#allocation4 + $0x10] sm:$0xf]
    %v764 = vld [vmem:[#allocation4 + $0x14] sm:$0xf]
    %v765 = vld [vmem:[#allocation4 + $0x18] sm:$0xf]
    %v766 = vld [vmem:[#allocation4 + $0x1c] sm:$0xf]
    %v767 = vld [vmem:[#allocation4 + $0x20] sm:$0xf]
    %v768 = vld [vmem:[#allocation4 + $0x24] sm:$0xf]
    %v769 = vld [vmem:[#allocation4 + $0x28] sm:$0xf]
    %v770 = vld [vmem:[#allocation4 + $0x2c] sm:$0xf]
    %v771 = vld [vmem:[#allocation4 + $0x30] sm:$0xf]
    %v772 = vld [vmem:[#allocation4 + $0x34] sm:$0xf]
    %v773 = vld [vmem:[#allocation4 + $0x38] sm:$0xf]
    %v774 = vld [vmem:[#allocation4 + $0x3c] sm:$0xf]
    %v775 = vld [vmem:[%s6] sm:$0x1]
    %v777 = vlaneseq
    %v778 = vshrl.u32 %v777, 7
    %v779 = vsub.s32 0, %v778
    %v780 = vrot.slane %v775, %v779
    %v798 = vunpack.c.l.b16 %v759
    %v799 = vunpack.c.l.b16 %v760
    %v800 = vunpack.c.l.b16 %v761
    %v801 = vunpack.c.l.b16 %v762
    %v802 = vunpack.c.l.b16 %v763
    %v803 = vunpack.c.l.b16 %v764
    %v804 = vunpack.c.l.b16 %v765
    %v805 = vunpack.c.l.b16 %v766
    %v806 = vunpack.c.l.b16 %v767
    %v807 = vunpack.c.l.b16 %v768
    %v808 = vunpack.c.l.b16 %v769
    %v809 = vunpack.c.l.b16 %v770
    %v810 = vunpack.c.l.b16 %v771
    %v811 = vunpack.c.l.b16 %v772
    %v812 = vunpack.c.l.b16 %v773
    %v813 = vunpack.c.l.b16 %v774
    %v814 = vpack.c.b16 %v799, %v798
    %v815 = vpack.c.b16 %v801, %v800
    %v816 = vpack.c.b16 %v803, %v802
    %v817 = vpack.c.b16 %v805, %v804
    %v818 = vpack.c.b16 %v807, %v806
    %v819 = vpack.c.b16 %v809, %v808
    %v820 = vpack.c.b16 %v811, %v810
    %v821 = vpack.c.b16 %v813, %v812
    %830 = vmatprep.subr.bf16.mxu0 0
    %831 = vmatpush1.bf16.msra.mxu0 %v821
    %832 = vmatprep.subr.bf16.mxu0 0
    %833 = vmatpush1.bf16.msra.mxu0 %v820
    %834 = vmatprep.subr.bf16.mxu0 0
    %835 = vmatpush1.bf16.msra.mxu0 %v819
    %836 = vmatprep.subr.bf16.mxu0 0
    %837 = vmatpush1.bf16.msra.mxu0 %v818
    %838 = vmatprep.subr.bf16.mxu0 0
    %839 = vmatpush1.bf16.msra.mxu0 %v817
    %840 = vmatprep.subr.bf16.mxu0 0
    %841 = vmatpush1.bf16.msra.mxu0 %v816
    %842 = vmatprep.subr.bf16.mxu0 0
    %843 = vmatpush1.bf16.msra.mxu0 %v815
    %844 = vmatprep.subr.bf16.mxu0 0
    %845 = vmatpush1.bf16.msra.mxu0 %v814
    %846 = vmatprep.subr.bf16.mxu0 0
    %847 = vmatpush2.bf16.msra.mxu0 0
    %848 = vmatprep.subr.bf16.mxu0 0
    %849 = vmatpush2.bf16.msra.mxu0 0
    %850 = vmatprep.subr.bf16.mxu0 0
    %851 = vmatpush2.bf16.msra.mxu0 0
    %852 = vmatprep.subr.bf16.mxu0 0
    %853 = vmatpush2.bf16.msra.mxu0 0
    %854 = vmatprep.subr.bf16.mxu0 0
    %855 = vmatpush2.bf16.msra.mxu0 0
    %856 = vmatprep.subr.bf16.mxu0 0
    %857 = vmatpush2.bf16.msra.mxu0 0
    %858 = vmatprep.subr.bf16.mxu0 0
    %859 = vmatpush2.bf16.msra.mxu0 0
    %860 = vmatprep.subr.bf16.mxu0 0
    %861 = vmatpush2.bf16.msra.mxu0 0
    %862 = vmatprep.mubr.bf16.mxu0 0
    %863 = vmatmul.mubr.bf16.gmra.mxu0 %v758
    %v864 = vpop.f32.mrf.mxu0
    %v865 = vadd.f32 %v780, %v864
    %v866 = vpop.f32.mrf.mxu0
    %v867 = vpop.f32.mrf.mxu0
    %v868 = vpop.f32.mrf.mxu0
    %869 = vdwg.mxu0
    %870 = vst [vmem:[%s7] sm:$0xff] %v865
    // Predicated region
    $region38: #{_logits_call.1} parent=1 // pred_check
      _
    $region39: #{_logits_call.1} parent=1 // pred_check_branch
      %872 = sbr.rel (0) target = $region41
    $region40: #{_logits_call.1} parent=1 // pred_region
      _
    $region41: #{_logits_call.1} parent=1 // pred_fallthru
      _
    // Predicated region
    $region42: #{_logits_call.1} parent=1 // pred_check
      _
    $region43: #{_logits_call.1} parent=1 // pred_check_branch
      %874 = sbr.rel (0) target = $region45
    $region44: #{_logits_call.1} parent=1 // pred_region
      _
    $region45: #{_logits_call.1} parent=1 // pred_fallthru
      _
    %875 = vsyncpa [#allocation3], 1
    %876 = vsyncpa [#allocation5], 1

</llo_original>
